<compile_context>
chip_gen: v7x
topology: tpu7x:2x2x1
jax: 0.10.0
libtpu: 0.0.40
codegen_flags: <defaults>
</compile_context>

<pallas_src>
import functools

import jax
import jax.numpy as jnp
from jax import lax
from jax.experimental import pallas as pl
from jax.experimental.pallas import tpu as pltpu


def _round_up(x, m):
    return (x + m - 1) // m * m


# ---------------------------------------------------------------------------
# Kernel 1: (optional BatchNorm apply) + fused bf16 [W_l | W_r] projection
# ---------------------------------------------------------------------------
def _project_kernel(*refs, use_bn):
    if use_bn:
        x_ref, wcat_ref, bcat_ref, scale_ref, shift_ref, h_ref, r_ref = refs
    else:
        x_ref, wcat_ref, bcat_ref, h_ref, r_ref = refs

    x = x_ref[...].astype(jnp.float32)
    if use_bn:
        # BN folded into per-feature scale/shift (batch statistics over ALL N
        # nodes, precomputed in the wrapper -- per-tile stats would be wrong).
        x = x * scale_ref[...] + shift_ref[...]

    # Single K=F_in bf16 matmul producing [h | r] (bias only on the root half).
    hr = jnp.dot(x.astype(jnp.bfloat16), wcat_ref[...],
                 preferred_element_type=jnp.float32)
    hr = hr + bcat_ref[...]

    f_pad = h_ref.shape[-1]
    h_ref[...] = hr[:, :f_pad].astype(h_ref.dtype)   # bf16 operand for A @ h
    r_ref[...] = hr[:, f_pad:].astype(r_ref.dtype)   # bf16 root term (+ bias)


# ---------------------------------------------------------------------------
# Kernel 2: tiled mean aggregation  out = inv_deg * (A @ h) + r
#           (accumulates directly into the VMEM-resident f32 output block)
# ---------------------------------------------------------------------------
def _aggregate_kernel(a_ref, h_ref, invdeg_ref, r_ref, o_ref):
    k = pl.program_id(1)

    @pl.when(k == 0)
    def _():
        o_ref[...] = jnp.zeros_like(o_ref)

    o_ref[...] += jnp.dot(a_ref[...], h_ref[...],
                          preferred_element_type=jnp.float32)

    @pl.when(k == pl.num_programs(1) - 1)
    def _():
        o_ref[...] = o_ref[...] * invdeg_ref[...] + r_ref[...].astype(jnp.float32)


# ---------------------------------------------------------------------------
# Wrapper
# ---------------------------------------------------------------------------
def graph_basic_block(x, edge_index, params, *, use_batch_norm=False,
                      eps=1e-5, tm=1024, tk=1024):
    """Forward pass of _GraphBasicBlock.

    x:          [N, F_in] float32 node features
    edge_index: [2, E]    int32   (row 0 = source, row 1 = target)
    params:     dict with 'w_l' [F_in, F_out], 'b_l' [F_out],
                'w_r' [F_in, F_out], 'gamma' [F_in], 'beta' [F_in]
    returns:    [N, F_out] float32

    Tiling: tm/tk default to 1024 (safe within v5e's 16 MiB default scoped VMEM).
    On v6e use tm=tk=2048; on v7x keep tm<=1024 (or raise vmem_limit_bytes) and
    ensure n/tm >= 2 so the parallel row axis feeds both TensorCores.
    """
    n, f_in = x.shape
    e = edge_index.shape[1]
    f_out = params["w_l"].shape[1]
    f_pad = _round_up(f_out, 128)                       # lane-dense output width

    # Clamp tiles to the problem size; keep rows a multiple of 16 (bf16 sublane
    # packing) and contraction dim a multiple of 128 (lane dim of A).
    tm = _round_up(min(tm, _round_up(n, 16)), 16)
    tk = _round_up(min(tk, _round_up(n, 128)), 128)
    n_rows = _round_up(n, tm)                           # output / A-row padding
    n_cols = _round_up(n, tk)                           # contraction padding

    # Projection runs over enough rows to cover both uses of x_n.
    tp = 256
    n_proj = _round_up(max(n_rows, n_cols), tp)

    x = x.astype(jnp.float32)

    # ---- plain-JAX glue ----------------------------------------------------
    # (a) BatchNorm1d batch statistics over ALL N (unpadded) nodes, folded into
    #     a per-feature scale/shift applied inside kernel 1.
    scale = shift = None
    if use_batch_norm:
        mean = jnp.mean(x, axis=0, keepdims=True)
        var = jnp.mean((x - mean) ** 2, axis=0, keepdims=True)
        gamma = params["gamma"].reshape(1, f_in).astype(jnp.float32)
        beta = params["beta"].reshape(1, f_in).astype(jnp.float32)
        scale = gamma * lax.rsqrt(var + eps)
        shift = beta - mean * scale

    # (b) edge_index -> dense 0/1 adjacency built directly in bf16 (one scatter
    #     pass, exact for multiplicities <= 256) + O(E) in-degree for the mean.
    src, dst = edge_index[0], edge_index[1]
    a_bf16 = jnp.zeros((n_rows, n_cols), jnp.bfloat16).at[dst, src].add(
        jnp.ones((e,), jnp.bfloat16))
    deg = jax.ops.segment_sum(jnp.ones((e,), jnp.float32), dst,
                              num_segments=n_rows)
    inv_deg = (1.0 / jnp.maximum(deg, 1.0)).reshape(n_rows, 1)  # zero-deg -> agg 0

    # (c) pad node features / weights to tile- and lane-aligned shapes.
    x_pad = jnp.zeros((n_proj, f_in), jnp.float32).at[:n].set(x)
    wl = jnp.zeros((f_in, f_pad), jnp.float32).at[:, :f_out].set(
        params["w_l"].astype(jnp.float32))
    wr = jnp.zeros((f_in, f_pad), jnp.float32).at[:, :f_out].set(
        params["w_r"].astype(jnp.float32))
    w_cat = jnp.concatenate([wl, wr], axis=1).astype(jnp.bfloat16)  # [F_in, 2*f_pad]
    b_cat = jnp.zeros((1, 2 * f_pad), jnp.float32).at[
        0, f_pad:f_pad + f_out].set(params["b_l"].astype(jnp.float32))

    # ---- kernel 1: norm + fused projection ---------------------------------
    proj_inputs = [x_pad, w_cat, b_cat]
    proj_specs = [
        pl.BlockSpec((tp, f_in), lambda i: (i, 0)),
        pl.BlockSpec((f_in, 2 * f_pad), lambda i: (0, 0)),
        pl.BlockSpec((1, 2 * f_pad), lambda i: (0, 0)),
    ]
    if use_batch_norm:
        proj_inputs += [scale, shift]
        proj_specs += [pl.BlockSpec((1, f_in), lambda i: (0, 0)),
                       pl.BlockSpec((1, f_in), lambda i: (0, 0))]

    h_full, r_full = pl.pallas_call(
        functools.partial(_project_kernel, use_bn=use_batch_norm),
        out_shape=(jax.ShapeDtypeStruct((n_proj, f_pad), jnp.bfloat16),
                   jax.ShapeDtypeStruct((n_proj, f_pad), jnp.bfloat16)),
        grid=(n_proj // tp,),
        in_specs=proj_specs,
        out_specs=(pl.BlockSpec((tp, f_pad), lambda i: (i, 0)),
                   pl.BlockSpec((tp, f_pad), lambda i: (i, 0))),
        compiler_params=pltpu.CompilerParams(
            dimension_semantics=("parallel",)),
    )(*proj_inputs)

    h = h_full[:n_cols]        # contraction-side projected features
    r = r_full[:n_rows]        # root term (+ bias), output-side rows

    # ---- kernel 2: tiled mean aggregation + root term ----------------------
    out_pad = pl.pallas_call(
        _aggregate_kernel,
        out_shape=jax.ShapeDtypeStruct((n_rows, f_pad), jnp.float32),
        grid=(n_rows // tm, n_cols // tk),
        in_specs=[
            pl.BlockSpec((tm, tk), lambda i, k: (i, k)),       # A tile (bf16)
            pl.BlockSpec((tk, f_pad), lambda i, k: (k, 0)),    # h tile (bf16)
            pl.BlockSpec((tm, 1), lambda i, k: (i, 0)),        # inv_deg (f32)
            pl.BlockSpec((tm, f_pad), lambda i, k: (i, 0)),    # root term r (bf16)
        ],
        out_specs=pl.BlockSpec((tm, f_pad), lambda i, k: (i, 0)),
        compiler_params=pltpu.CompilerParams(
            dimension_semantics=("parallel", "arbitrary")),
    )(a_bf16, h, inv_deg, r)

    return out_pad[:n, :f_out]


# ---------------------------------------------------------------------------
# Parameters / reference / test
# ---------------------------------------------------------------------------
def init_params(key, input_size, output_size):
    """SAGEConv params (lin_l with bias, lin_r without) + BatchNorm1d affine."""
    k1, k2, k3 = jax.random.split(key, 3)
    scale = 1.0 / jnp.sqrt(jnp.float32(input_size))
    return {
        "w_l": jax.random.uniform(k1, (input_size, output_size), jnp.float32,
                                  -scale, scale),
        "b_l": jax.random.uniform(k2, (output_size,), jnp.float32, -scale, scale),
        "w_r": jax.random.uniform(k3, (input_size, output_size), jnp.float32,
                                  -scale, scale),
        "gamma": jnp.ones((input_size,), jnp.float32),
        "beta": jnp.zeros((input_size,), jnp.float32),
    }


def _reference(x, edge_index, params, *, use_batch_norm, eps=1e-5):
    """Pure-JAX (f32) reference for correctness checking."""
    n = x.shape[0]
    if use_batch_norm:
        mean = jnp.mean(x, axis=0, keepdims=True)
        var = jnp.mean((x - mean) ** 2, axis=0, keepdims=True)
        x = (x - mean) / jnp.sqrt(var + eps) * params["gamma"] + params["beta"]
    src, dst = edge_index[0], edge_index[1]
    adj = jnp.zeros((n, n), jnp.float32).at[dst, src].add(1.0)
    deg = jnp.maximum(jnp.sum(adj, axis=1, keepdims=True), 1.0)
    agg = (adj / deg) @ x
    return agg @ params["w_l"] + params["b_l"] + x @ params["w_r"]


if __name__ == "__main__":
    N, E = 8, 16            # nodes, edges
    F_IN, F_OUT = 32, 16    # input_size, output_size

    key = jax.random.PRNGKey(0)
    kx, ke, kp = jax.random.split(key, 3)

    x = jax.random.normal(kx, (N, F_IN), jnp.float32)
    edge_index = jax.random.randint(ke, (2, E), 0, N, jnp.int32)
    params = init_params(kp, F_IN, F_OUT)

    # bf16 operands (A, h, r, x-cast) -> ~0.5% relative error vs f32 reference.
    TOL = dict(atol=3e-2, rtol=3e-2)

    # default branch: norm = Identity
    out = graph_basic_block(x, edge_index, params, use_batch_norm=False)
    out = jax.block_until_ready(out)
    ref = _reference(x, edge_index, params, use_batch_norm=False)
    assert out.shape == (N, F_OUT)
    assert jnp.allclose(out, ref, **TOL), float(jnp.max(jnp.abs(out - ref)))

    # BatchNorm1d branch (training-mode batch statistics)
    out_bn = graph_basic_block(x, edge_index, params, use_batch_norm=True)
    out_bn = jax.block_until_ready(out_bn)
    ref_bn = _reference(x, edge_index, params, use_batch_norm=True)
    assert jnp.allclose(out_bn, ref_bn, **TOL), float(jnp.max(jnp.abs(out_bn - ref_bn)))

    print("KERNEL_OK")
</pallas_src>

<mosaic_0001>
module attributes {stable_mosaic.version = 11 : i64} {
  func.func @_project_kernel(%arg0: i32, %arg1: memref<256x32xf32, #tpu.memory_space<vmem>>, %arg2: memref<32x256xbf16, #tpu.memory_space<vmem>>, %arg3: memref<1x256xf32, #tpu.memory_space<vmem>>, %arg4: memref<256x128xbf16, #tpu.memory_space<vmem>>, %arg5: memref<256x128xbf16, #tpu.memory_space<vmem>>) attributes {dimension_semantics = [#tpu.dimension_semantics<parallel>], iteration_bounds = array<i64: 1>, scalar_prefetch = 0 : i64, scratch_operands = 0 : i64, tpu.core_type = #tpu.core_type<tc>, window_params = [{transform_indices = @transform_0, window_bounds = array<i64: 256, 32>}, {pipeline_mode = #tpu.pipeline_mode<synchronous>, transform_indices = @transform_1, window_bounds = array<i64: 32, 256>}, {pipeline_mode = #tpu.pipeline_mode<synchronous>, transform_indices = @transform_2, window_bounds = array<i64: 1, 256>}, {transform_indices = @transform_3, window_bounds = array<i64: 256, 128>}, {transform_indices = @transform_4, window_bounds = array<i64: 256, 128>}]} {
    %c0 = arith.constant 0 : index
    %c0_0 = arith.constant 0 : index
    %0 = vector.load %arg1[%c0, %c0_0] : memref<256x32xf32, #tpu.memory_space<vmem>>, vector<256x32xf32>
    %1 = arith.truncf %0 : vector<256x32xf32> to vector<256x32xbf16>
    %c0_1 = arith.constant 0 : index
    %c0_2 = arith.constant 0 : index
    %2 = vector.load %arg2[%c0_1, %c0_2] : memref<32x256xbf16, #tpu.memory_space<vmem>>, vector<32x256xbf16>
    %cst = arith.constant dense<0.000000e+00> : vector<256x256xf32>
    %3 = tpu.matmul %1, %2, %cst {dimension_numbers = #tpu.dot_dimension_numbers<[1], [0], [0], [1], [0, 0, 1, 1], [], []>} : vector<256x32xbf16>, vector<32x256xbf16>, vector<256x256xf32> -> vector<256x256xf32>
    %c0_3 = arith.constant 0 : index
    %c0_4 = arith.constant 0 : index
    %4 = vector.load %arg3[%c0_3, %c0_4] : memref<1x256xf32, #tpu.memory_space<vmem>>, vector<1x256xf32>
    %5 = vector.broadcast %4 : vector<1x256xf32> to vector<256x256xf32>
    %6 = arith.addf %3, %5 : vector<256x256xf32>
    %7 = vector.extract_strided_slice %6 {offsets = [0, 0], sizes = [256, 128], strides = [1, 1]} : vector<256x256xf32> to vector<256x128xf32>
    %8 = arith.truncf %7 : vector<256x128xf32> to vector<256x128xbf16>
    %c0_5 = arith.constant 0 : index
    %c0_6 = arith.constant 0 : index
    %9 = vector.load %arg4[%c0_5, %c0_6] : memref<256x128xbf16, #tpu.memory_space<vmem>>, vector<256x128xbf16>
    tpu.vector_store %arg4[%c0_5, %c0_6], %8 {strides = array<i32>} : memref<256x128xbf16, #tpu.memory_space<vmem>>, vector<256x128xbf16>,
    %10 = vector.extract_strided_slice %6 {offsets = [0, 128], sizes = [256, 128], strides = [1, 1]} : vector<256x256xf32> to vector<256x128xf32>
    %11 = arith.truncf %10 : vector<256x128xf32> to vector<256x128xbf16>
    %c0_7 = arith.constant 0 : index
    %c0_8 = arith.constant 0 : index
    %12 = vector.load %arg5[%c0_7, %c0_8] : memref<256x128xbf16, #tpu.memory_space<vmem>>, vector<256x128xbf16>
    tpu.vector_store %arg5[%c0_7, %c0_8], %11 {strides = array<i32>} : memref<256x128xbf16, #tpu.memory_space<vmem>>, vector<256x128xbf16>,
    return
  }
  func.func @transform_0(%arg0: i32) -> (i32, i32) {
    %c0_i32 = arith.constant 0 : i32
    %c0_i32_0 = arith.constant 0 : i32
    return %arg0, %c0_i32 : i32, i32
  }
  func.func @transform_1(%arg0: i32) -> (i32, i32) {
    %c0_i32 = arith.constant 0 : i32
    %c0_i32_0 = arith.constant 0 : i32
    %c0_i32_1 = arith.constant 0 : i32
    return %c0_i32, %c0_i32_0 : i32, i32
  }
  func.func @transform_2(%arg0: i32) -> (i32, i32) {
    %c0_i32 = arith.constant 0 : i32
    %c0_i32_0 = arith.constant 0 : i32
    %c0_i32_1 = arith.constant 0 : i32
    return %c0_i32, %c0_i32_0 : i32, i32
  }
  func.func @transform_3(%arg0: i32) -> (i32, i32) {
    %c0_i32 = arith.constant 0 : i32
    %c0_i32_0 = arith.constant 0 : i32
    return %arg0, %c0_i32 : i32, i32
  }
  func.func @transform_4(%arg0: i32) -> (i32, i32) {
    %c0_i32 = arith.constant 0 : i32
    %c0_i32_0 = arith.constant 0 : i32
    return %arg0, %c0_i32 : i32, i32
  }
}

</mosaic_0001>

<llo_original>
// kernel: tpu_custom_call.1
$region0: #{tpu_custom_call.1}
  #allocation0 [shape = 'u32[]', space=smem, size = 0x4, offset = 0x4, fixed_abs, tag = 'smem constant byte address 0x4 - core index']
  #allocation1 [shape = 'u32[144,128]{1,0:T(1,128)}', space=vmem, size = 0x12000, scoped, tag = 'internal scratch']
  %s0 = inlined_call_operand.vmem [shape: f32[256,32], index: 0, kind: input, shape index: {}]
  %s1 = inlined_call_operand.vmem [shape: bf16[32,256], index: 1, kind: input, shape index: {}]
  %s2 = inlined_call_operand.vmem [shape: f32[1,256], index: 2, kind: input, shape index: {}]
  %s3 = inlined_call_operand.hbm [shape: bf16[256,128], index: 3, kind: output, shape index: {0}]
  %s4 = inlined_call_operand.hbm [shape: bf16[256,128], index: 4, kind: output, shape index: {1}]
  %5 = xla_tuple %s3, %s4
  %s6 = sld [smem:[#allocation0]]
  $region30: #{tpu_custom_call.1} parent=0
    _
  %s8 = ssub.s32 1, %s6
  %s9 = scalar_select 0, %s8, %s6
  $region1: #{tpu_custom_call.1} parent=0
    #allocation2 [shape = 'u8[65536]{0}', space=vmem, size = 0x10000, scoped, tag = 'output window, operand 0, single buffered']
    #allocation3 [shape = 's32[1]{0}', space=sflag, size = 0x4, scoped, tag = 'scoped memory for tpu_custom_call.1']
    #allocation4 [shape = 'u8[65536]{0}', space=vmem, size = 0x10000, scoped, tag = 'output window, operand 1, single buffered']
    #allocation5 [shape = 's32[1]{0}', space=sflag, size = 0x4, scoped, tag = 'scoped memory for tpu_custom_call.1']
    %10 = vsyncpa [#allocation3], 0
    %11 = vsyncpa [#allocation5], 0
    // Predicated region
    $region2: #{tpu_custom_call.1} parent=1 // pred_check
      _
    $region3: #{tpu_custom_call.1} parent=1 // pred_check_branch
      %13 = sbr.rel (0) target = $region5
    $region4: #{tpu_custom_call.1} parent=1 // pred_region
      _
    $region5: #{tpu_custom_call.1} parent=1 // pred_fallthru
      _
    // Predicated region
    $region6: #{tpu_custom_call.1} parent=1 // pred_check
      _
    $region7: #{tpu_custom_call.1} parent=1 // pred_check_branch
      %15 = sbr.rel (0) target = $region9
    $region8: #{tpu_custom_call.1} parent=1 // pred_region
      _
    $region9: #{tpu_custom_call.1} parent=1 // pred_fallthru
      _
    // Predicated region
    $region10: #{tpu_custom_call.1} parent=1 // pred_check
      _
    $region11: #{tpu_custom_call.1} parent=1 // pred_check_branch
      %17 = sbr.rel (0) target = $region13
    $region12: #{tpu_custom_call.1} parent=1 // pred_region
      _
    $region13: #{tpu_custom_call.1} parent=1 // pred_fallthru
      _
    %v19 = vld [vmem:[%s0] sm:$0xff]
    %v20 = vld [vmem:[%s0 + $0x8] sm:$0xff]
    %v21 = vld [vmem:[%s0 + $0x10] sm:$0xff]
    %v22 = vld [vmem:[%s0 + $0x18] sm:$0xff]
    %v23 = vld [vmem:[%s0 + $0x20] sm:$0xff]
    %v24 = vld [vmem:[%s0 + $0x28] sm:$0xff]
    %v25 = vld [vmem:[%s0 + $0x30] sm:$0xff]
    %v26 = vld [vmem:[%s0 + $0x38] sm:$0xff]
    %v27 = vld [vmem:[%s0 + $0x40] sm:$0xff]
    %v28 = vld [vmem:[%s0 + $0x48] sm:$0xff]
    %v29 = vld [vmem:[%s0 + $0x50] sm:$0xff]
    %v30 = vld [vmem:[%s0 + $0x58] sm:$0xff]
    %v31 = vld [vmem:[%s0 + $0x60] sm:$0xff]
    %v32 = vld [vmem:[%s0 + $0x68] sm:$0xff]
    %v33 = vld [vmem:[%s0 + $0x70] sm:$0xff]
    %v34 = vld [vmem:[%s0 + $0x78] sm:$0xff]
    %v35 = vld [vmem:[%s0 + $0x80] sm:$0xff]
    %v36 = vld [vmem:[%s0 + $0x88] sm:$0xff]
    %v37 = vld [vmem:[%s0 + $0x90] sm:$0xff]
    %v38 = vld [vmem:[%s0 + $0x98] sm:$0xff]
    %v39 = vld [vmem:[%s0 + $0xa0] sm:$0xff]
    %v40 = vld [vmem:[%s0 + $0xa8] sm:$0xff]
    %v41 = vld [vmem:[%s0 + $0xb0] sm:$0xff]
    %v42 = vld [vmem:[%s0 + $0xb8] sm:$0xff]
    %v43 = vld [vmem:[%s0 + $0xc0] sm:$0xff]
    %v44 = vld [vmem:[%s0 + $0xc8] sm:$0xff]
    %v45 = vld [vmem:[%s0 + $0xd0] sm:$0xff]
    %v46 = vld [vmem:[%s0 + $0xd8] sm:$0xff]
    %v47 = vld [vmem:[%s0 + $0xe0] sm:$0xff]
    %v48 = vld [vmem:[%s0 + $0xe8] sm:$0xff]
    %v49 = vld [vmem:[%s0 + $0xf0] sm:$0xff]
    %v50 = vld [vmem:[%s0 + $0xf8] sm:$0xff]
    %v51 = vpack.c.bf16 %v20, %v19
    %v52 = vpack.c.bf16 %v22, %v21
    %v53 = vpack.c.bf16 %v24, %v23
    %v54 = vpack.c.bf16 %v26, %v25
    %v55 = vpack.c.bf16 %v28, %v27
    %v56 = vpack.c.bf16 %v30, %v29
    %v57 = vpack.c.bf16 %v32, %v31
    %v58 = vpack.c.bf16 %v34, %v33
    %v59 = vpack.c.bf16 %v36, %v35
    %v60 = vpack.c.bf16 %v38, %v37
    %v61 = vpack.c.bf16 %v40, %v39
    %v62 = vpack.c.bf16 %v42, %v41
    %v63 = vpack.c.bf16 %v44, %v43
    %v64 = vpack.c.bf16 %v46, %v45
    %v65 = vpack.c.bf16 %v48, %v47
    %v66 = vpack.c.bf16 %v50, %v49
    %v67 = vld [vmem:[%s1] sm:$0xff]
    %v68 = vld [vmem:[%s1 + $0x8] sm:$0xff]
    %v69 = vld [vmem:[%s1 + $0x10] sm:$0xff]
    %v70 = vld [vmem:[%s1 + $0x18] sm:$0xff]
    %v71 = vld [vmem:[%s2] sm:$0x3]
    %v73 = vlaneseq
    %v74 = vshrl.u32 %v73, 7
    %v75 = vsub.s32 0, %v74
    %v76 = vrot.slane %v71, %v75
    %v77 = vlaneseq
    %v78 = vshrl.u32 %v77, 7
    %v79 = vsub.s32 1, %v78
    %v80 = vrot.slane %v71, %v79
    %v87 = vunpack.c.l.b16 %v67
    %v88 = vunpack.c.h.b16 %v67
    %v89 = vunpack.c.l.b16 %v68
    %v90 = vunpack.c.h.b16 %v68
    %v91 = vunpack.c.l.b16 %v69
    %v92 = vunpack.c.h.b16 %v69
    %v93 = vunpack.c.l.b16 %v70
    %v94 = vunpack.c.h.b16 %v70
    %v95 = vpack.c.b16 %v89, %v87
    %v96 = vpack.c.b16 %v90, %v88
    %v97 = vpack.c.b16 %v93, %v91
    %v98 = vpack.c.b16 %v94, %v92
    %vm103 = vcmask 261120
    %v105 = vsel %vm103, %v51, 0
    %v108 = vsel %vm103, %v52, 0
    %v111 = vsel %vm103, %v53, 0
    %v114 = vsel %vm103, %v54, 0
    %v117 = vsel %vm103, %v55, 0
    %v120 = vsel %vm103, %v56, 0
    %v123 = vsel %vm103, %v57, 0
    %v126 = vsel %vm103, %v58, 0
    %v129 = vsel %vm103, %v59, 0
    %v132 = vsel %vm103, %v60, 0
    %v135 = vsel %vm103, %v61, 0
    %v138 = vsel %vm103, %v62, 0
    %v141 = vsel %vm103, %v63, 0
    %v144 = vsel %vm103, %v64, 0
    %v147 = vsel %vm103, %v65, 0
    %v150 = vsel %vm103, %v66, 0
    %152 = vmatprep.subr.bf16.mxu0 %v96
    %153 = vmatpush1.bf16.msra.mxu0 %v95
    %154 = vmatprep.subr.bf16.mxu0 %v98
    %155 = vmatpush1.bf16.msra.mxu0 %v97
    %156 = vmatprep.subr.bf16.mxu0 0
    %157 = vmatpush1.bf16.msra.mxu0 0
    %158 = vmatprep.subr.bf16.mxu0 0
    %159 = vmatpush1.bf16.msra.mxu0 0
    %160 = vmatprep.subr.bf16.mxu0 0
    %161 = vmatpush1.bf16.msra.mxu0 0
    %162 = vmatprep.subr.bf16.mxu0 0
    %163 = vmatpush1.bf16.msra.mxu0 0
    %164 = vmatprep.subr.bf16.mxu0 0
    %165 = vmatpush1.bf16.msra.mxu0 0
    %166 = vmatprep.subr.bf16.mxu0 0
    %167 = vmatpush1.bf16.msra.mxu0 0
    %168 = vmatprep.subr.bf16.mxu0 0
    %169 = vmatpush1.bf16.msra.mxu0 0
    %170 = vmatprep.subr.bf16.mxu0 0
    %171 = vmatpush1.bf16.msra.mxu0 0
    %172 = vmatprep.subr.bf16.mxu0 0
    %173 = vmatpush1.bf16.msra.mxu0 0
    %174 = vmatprep.subr.bf16.mxu0 0
    %175 = vmatpush1.bf16.msra.mxu0 0
    %176 = vmatprep.subr.bf16.mxu0 0
    %177 = vmatpush1.bf16.msra.mxu0 0
    %178 = vmatprep.subr.bf16.mxu0 0
    %179 = vmatpush1.bf16.msra.mxu0 0
    %180 = vmatprep.subr.bf16.mxu0 0
    %181 = vmatpush1.bf16.msra.mxu0 0
    %182 = vmatprep.subr.bf16.mxu0 0
    %183 = vmatpush1.bf16.msra.mxu0 0
    %184 = vmatprep.mubr.bf16.mxu0 0
    %185 = vmatmul.mubr.bf16.gmra.mrb[0].mxu0 %v105
    %v186 = vpop.f32.mrb[0].mxu0
    %v187 = vadd.f32 %v76, %v186
    %v188 = vpop.f32.mrb[0].mxu0
    %v189 = vadd.f32 %v80, %v188
    %v190 = vpop.f32.mrb[0].mxu0
    %v191 = vadd.f32 %v76, %v190
    %v192 = vpop.f32.mrb[0].mxu0
    %v193 = vadd.f32 %v80, %v192
    %194 = vmatprep.mubr.bf16.mxu0 0
    %195 = vmatmul.mubr.bf16.gmra.mrb[0].mxu0 %v108
    %v196 = vpop.f32.mrb[0].mxu0
    %v197 = vadd.f32 %v76, %v196
    %v198 = vpop.f32.mrb[0].mxu0
    %v199 = vadd.f32 %v80, %v198
    %v200 = vpop.f32.mrb[0].mxu0
    %v201 = vadd.f32 %v76, %v200
    %v202 = vpop.f32.mrb[0].mxu0
    %v203 = vadd.f32 %v80, %v202
    %204 = vmatprep.mubr.bf16.mxu0 0
    %205 = vmatmul.mubr.bf16.gmra.mrb[0].mxu0 %v111
    %v206 = vpop.f32.mrb[0].mxu0
    %v207 = vadd.f32 %v76, %v206
    %v208 = vpop.f32.mrb[0].mxu0
    %v209 = vadd.f32 %v80, %v208
    %v210 = vpop.f32.mrb[0].mxu0
    %v211 = vadd.f32 %v76, %v210
    %v212 = vpop.f32.mrb[0].mxu0
    %v213 = vadd.f32 %v80, %v212
    %214 = vmatprep.mubr.bf16.mxu0 0
    %215 = vmatmul.mubr.bf16.gmra.mrb[0].mxu0 %v114
    %v216 = vpop.f32.mrb[0].mxu0
    %v217 = vadd.f32 %v76, %v216
    %v218 = vpop.f32.mrb[0].mxu0
    %v219 = vadd.f32 %v80, %v218
    %v220 = vpop.f32.mrb[0].mxu0
    %v221 = vadd.f32 %v76, %v220
    %v222 = vpop.f32.mrb[0].mxu0
    %v223 = vadd.f32 %v80, %v222
    %224 = vmatprep.mubr.bf16.mxu0 0
    %225 = vmatmul.mubr.bf16.gmra.mrb[0].mxu0 %v117
    %v226 = vpop.f32.mrb[0].mxu0
    %v227 = vadd.f32 %v76, %v226
    %v228 = vpop.f32.mrb[0].mxu0
    %v229 = vadd.f32 %v80, %v228
    %v230 = vpop.f32.mrb[0].mxu0
    %v231 = vadd.f32 %v76, %v230
    %v232 = vpop.f32.mrb[0].mxu0
    %v233 = vadd.f32 %v80, %v232
    %234 = vmatprep.mubr.bf16.mxu0 0
    %235 = vmatmul.mubr.bf16.gmra.mrb[0].mxu0 %v120
    %v236 = vpop.f32.mrb[0].mxu0
    %v237 = vadd.f32 %v76, %v236
    %v238 = vpop.f32.mrb[0].mxu0
    %v239 = vadd.f32 %v80, %v238
    %v240 = vpop.f32.mrb[0].mxu0
    %v241 = vadd.f32 %v76, %v240
    %v242 = vpop.f32.mrb[0].mxu0
    %v243 = vadd.f32 %v80, %v242
    %244 = vmatprep.mubr.bf16.mxu0 0
    %245 = vmatmul.mubr.bf16.gmra.mrb[0].mxu0 %v123
    %v246 = vpop.f32.mrb[0].mxu0
    %v247 = vadd.f32 %v76, %v246
    %v248 = vpop.f32.mrb[0].mxu0
    %v249 = vadd.f32 %v80, %v248
    %v250 = vpop.f32.mrb[0].mxu0
    %v251 = vadd.f32 %v76, %v250
    %v252 = vpop.f32.mrb[0].mxu0
    %v253 = vadd.f32 %v80, %v252
    %254 = vmatprep.mubr.bf16.mxu0 0
    %255 = vmatmul.mubr.bf16.gmra.mrb[0].mxu0 %v126
    %v256 = vpop.f32.mrb[0].mxu0
    %v257 = vadd.f32 %v76, %v256
    %v258 = vpop.f32.mrb[0].mxu0
    %v259 = vadd.f32 %v80, %v258
    %v260 = vpop.f32.mrb[0].mxu0
    %v261 = vadd.f32 %v76, %v260
    %v262 = vpop.f32.mrb[0].mxu0
    %v263 = vadd.f32 %v80, %v262
    %264 = vmatprep.mubr.bf16.mxu0 0
    %265 = vmatmul.mubr.bf16.gmra.mrb[0].mxu0 %v129
    %v266 = vpop.f32.mrb[0].mxu0
    %v267 = vadd.f32 %v76, %v266
    %v268 = vpop.f32.mrb[0].mxu0
    %v269 = vadd.f32 %v80, %v268
    %v270 = vpop.f32.mrb[0].mxu0
    %v271 = vadd.f32 %v76, %v270
    %v272 = vpop.f32.mrb[0].mxu0
    %v273 = vadd.f32 %v80, %v272
    %274 = vmatprep.mubr.bf16.mxu0 0
    %275 = vmatmul.mubr.bf16.gmra.mrb[0].mxu0 %v132
    %v276 = vpop.f32.mrb[0].mxu0
    %v277 = vadd.f32 %v76, %v276
    %v278 = vpop.f32.mrb[0].mxu0
    %v279 = vadd.f32 %v80, %v278
    %v280 = vpop.f32.mrb[0].mxu0
    %v281 = vadd.f32 %v76, %v280
    %v282 = vpop.f32.mrb[0].mxu0
    %v283 = vadd.f32 %v80, %v282
    %284 = vmatprep.mubr.bf16.mxu0 0
    %285 = vmatmul.mubr.bf16.gmra.mrb[0].mxu0 %v135
    %v286 = vpop.f32.mrb[0].mxu0
    %v287 = vadd.f32 %v76, %v286
    %v288 = vpop.f32.mrb[0].mxu0
    %v289 = vadd.f32 %v80, %v288
    %v290 = vpop.f32.mrb[0].mxu0
    %v291 = vadd.f32 %v76, %v290
    %v292 = vpop.f32.mrb[0].mxu0
    %v293 = vadd.f32 %v80, %v292
    %294 = vmatprep.mubr.bf16.mxu0 0
    %295 = vmatmul.mubr.bf16.gmra.mrb[0].mxu0 %v138
    %v296 = vpop.f32.mrb[0].mxu0
    %v297 = vadd.f32 %v76, %v296
    %v298 = vpop.f32.mrb[0].mxu0
    %v299 = vadd.f32 %v80, %v298
    %v300 = vpop.f32.mrb[0].mxu0
    %v301 = vadd.f32 %v76, %v300
    %v302 = vpop.f32.mrb[0].mxu0
    %v303 = vadd.f32 %v80, %v302
    %304 = vmatprep.mubr.bf16.mxu0 0
    %305 = vmatmul.mubr.bf16.gmra.mrb[0].mxu0 %v141
    %v306 = vpop.f32.mrb[0].mxu0
    %v307 = vadd.f32 %v76, %v306
    %v308 = vpop.f32.mrb[0].mxu0
    %v309 = vadd.f32 %v80, %v308
    %v310 = vpop.f32.mrb[0].mxu0
    %v311 = vadd.f32 %v76, %v310
    %v312 = vpop.f32.mrb[0].mxu0
    %v313 = vadd.f32 %v80, %v312
    %314 = vmatprep.mubr.bf16.mxu0 0
    %315 = vmatmul.mubr.bf16.gmra.mrb[0].mxu0 %v144
    %v316 = vpop.f32.mrb[0].mxu0
    %v317 = vadd.f32 %v76, %v316
    %v318 = vpop.f32.mrb[0].mxu0
    %v319 = vadd.f32 %v80, %v318
    %v320 = vpop.f32.mrb[0].mxu0
    %v321 = vadd.f32 %v76, %v320
    %v322 = vpop.f32.mrb[0].mxu0
    %v323 = vadd.f32 %v80, %v322
    %324 = vmatprep.mubr.bf16.mxu0 0
    %325 = vmatmul.mubr.bf16.gmra.mrb[0].mxu0 %v147
    %v326 = vpop.f32.mrb[0].mxu0
    %v327 = vadd.f32 %v76, %v326
    %v328 = vpop.f32.mrb[0].mxu0
    %v329 = vadd.f32 %v80, %v328
    %v330 = vpop.f32.mrb[0].mxu0
    %v331 = vadd.f32 %v76, %v330
    %v332 = vpop.f32.mrb[0].mxu0
    %v333 = vadd.f32 %v80, %v332
    %334 = vmatprep.mubr.bf16.mxu0 0
    %335 = vmatmul.mubr.bf16.gmra.mrb[0].mxu0 %v150
    %v336 = vpop.f32.mrb[0].mxu0
    %v337 = vadd.f32 %v76, %v336
    %v338 = vpop.f32.mrb[0].mxu0
    %v339 = vadd.f32 %v80, %v338
    %v340 = vpop.f32.mrb[0].mxu0
    %v341 = vadd.f32 %v76, %v340
    %v342 = vpop.f32.mrb[0].mxu0
    %v343 = vadd.f32 %v80, %v342
    %344 = vdwg.mxu0
    %v345 = vpack.c.bf16 %v191, %v187
    %v346 = vpack.c.bf16 %v201, %v197
    %v347 = vpack.c.bf16 %v211, %v207
    %v348 = vpack.c.bf16 %v221, %v217
    %v349 = vpack.c.bf16 %v231, %v227
    %v350 = vpack.c.bf16 %v241, %v237
    %v351 = vpack.c.bf16 %v251, %v247
    %v352 = vpack.c.bf16 %v261, %v257
    %v353 = vpack.c.bf16 %v271, %v267
    %v354 = vpack.c.bf16 %v281, %v277
    %v355 = vpack.c.bf16 %v291, %v287
    %v356 = vpack.c.bf16 %v301, %v297
    %v357 = vpack.c.bf16 %v311, %v307
    %v358 = vpack.c.bf16 %v321, %v317
    %v359 = vpack.c.bf16 %v331, %v327
    %v360 = vpack.c.bf16 %v341, %v337
    %v377 = vunpack.c.l.b16 %v345
    %v378 = vunpack.c.h.b16 %v345
    %v379 = vunpack.c.l.b16 %v346
    %v380 = vunpack.c.h.b16 %v346
    %v381 = vunpack.c.l.b16 %v347
    %v382 = vunpack.c.h.b16 %v347
    %v383 = vunpack.c.l.b16 %v348
    %v384 = vunpack.c.h.b16 %v348
    %v385 = vunpack.c.l.b16 %v349
    %v386 = vunpack.c.h.b16 %v349
    %v387 = vunpack.c.l.b16 %v350
    %v388 = vunpack.c.h.b16 %v350
    %v389 = vunpack.c.l.b16 %v351
    %v390 = vunpack.c.h.b16 %v351
    %v391 = vunpack.c.l.b16 %v352
    %v392 = vunpack.c.h.b16 %v352
    %v393 = vunpack.c.l.b16 %v353
    %v394 = vunpack.c.h.b16 %v353
    %v395 = vunpack.c.l.b16 %v354
    %v396 = vunpack.c.h.b16 %v354
    %v397 = vunpack.c.l.b16 %v355
    %v398 = vunpack.c.h.b16 %v355
    %v399 = vunpack.c.l.b16 %v356
    %v400 = vunpack.c.h.b16 %v356
    %v401 = vunpack.c.l.b16 %v357
    %v402 = vunpack.c.h.b16 %v357
    %v403 = vunpack.c.l.b16 %v358
    %v404 = vunpack.c.h.b16 %v358
    %v405 = vunpack.c.l.b16 %v359
    %v406 = vunpack.c.h.b16 %v359
    %v407 = vunpack.c.l.b16 %v360
    %v408 = vunpack.c.h.b16 %v360
    %v409 = vpack.c.b16 %v377, %v377
    %v410 = vpack.c.b16 %v378, %v378
    %v411 = vpack.c.b16 %v379, %v379
    %v412 = vpack.c.b16 %v380, %v380
    %v413 = vpack.c.b16 %v381, %v381
    %v414 = vpack.c.b16 %v382, %v382
    %v415 = vpack.c.b16 %v383, %v383
    %v416 = vpack.c.b16 %v384, %v384
    %v417 = vpack.c.b16 %v385, %v385
    %v418 = vpack.c.b16 %v386, %v386
    %v419 = vpack.c.b16 %v387, %v387
    %v420 = vpack.c.b16 %v388, %v388
    %v421 = vpack.c.b16 %v389, %v389
    %v422 = vpack.c.b16 %v390, %v390
    %v423 = vpack.c.b16 %v391, %v391
    %v424 = vpack.c.b16 %v392, %v392
    %v425 = vpack.c.b16 %v393, %v393
    %v426 = vpack.c.b16 %v394, %v394
    %v427 = vpack.c.b16 %v395, %v395
    %v428 = vpack.c.b16 %v396, %v396
    %v429 = vpack.c.b16 %v397, %v397
    %v430 = vpack.c.b16 %v398, %v398
    %v431 = vpack.c.b16 %v399, %v399
    %v432 = vpack.c.b16 %v400, %v400
    %v433 = vpack.c.b16 %v401, %v401
    %v434 = vpack.c.b16 %v402, %v402
    %v435 = vpack.c.b16 %v403, %v403
    %v436 = vpack.c.b16 %v404, %v404
    %v437 = vpack.c.b16 %v405, %v405
    %v438 = vpack.c.b16 %v406, %v406
    %v439 = vpack.c.b16 %v407, %v407
    %v440 = vpack.c.b16 %v408, %v408
    %473 = vst [vmem:[#allocation2] sm:$0xf] %v409
    %474 = vst [vmem:[#allocation2 + $0x4] sm:$0xf] %v410
    %475 = vst [vmem:[#allocation2 + $0x8] sm:$0xf] %v411
    %476 = vst [vmem:[#allocation2 + $0xc] sm:$0xf] %v412
    %477 = vst [vmem:[#allocation2 + $0x10] sm:$0xf] %v413
    %478 = vst [vmem:[#allocation2 + $0x14] sm:$0xf] %v414
    %479 = vst [vmem:[#allocation2 + $0x18] sm:$0xf] %v415
    %480 = vst [vmem:[#allocation2 + $0x1c] sm:$0xf] %v416
    %481 = vst [vmem:[#allocation2 + $0x20] sm:$0xf] %v417
    %482 = vst [vmem:[#allocation2 + $0x24] sm:$0xf] %v418
    %483 = vst [vmem:[#allocation2 + $0x28] sm:$0xf] %v419
    %484 = vst [vmem:[#allocation2 + $0x2c] sm:$0xf] %v420
    %485 = vst [vmem:[#allocation2 + $0x30] sm:$0xf] %v421
    %486 = vst [vmem:[#allocation2 + $0x34] sm:$0xf] %v422
    %487 = vst [vmem:[#allocation2 + $0x38] sm:$0xf] %v423
    %488 = vst [vmem:[#allocation2 + $0x3c] sm:$0xf] %v424
    %489 = vst [vmem:[#allocation2 + $0x40] sm:$0xf] %v425
    %490 = vst [vmem:[#allocation2 + $0x44] sm:$0xf] %v426
    %491 = vst [vmem:[#allocation2 + $0x48] sm:$0xf] %v427
    %492 = vst [vmem:[#allocation2 + $0x4c] sm:$0xf] %v428
    %493 = vst [vmem:[#allocation2 + $0x50] sm:$0xf] %v429
    %494 = vst [vmem:[#allocation2 + $0x54] sm:$0xf] %v430
    %495 = vst [vmem:[#allocation2 + $0x58] sm:$0xf] %v431
    %496 = vst [vmem:[#allocation2 + $0x5c] sm:$0xf] %v432
    %497 = vst [vmem:[#allocation2 + $0x60] sm:$0xf] %v433
    %498 = vst [vmem:[#allocation2 + $0x64] sm:$0xf] %v434
    %499 = vst [vmem:[#allocation2 + $0x68] sm:$0xf] %v435
    %500 = vst [vmem:[#allocation2 + $0x6c] sm:$0xf] %v436
    %501 = vst [vmem:[#allocation2 + $0x70] sm:$0xf] %v437
    %502 = vst [vmem:[#allocation2 + $0x74] sm:$0xf] %v438
    %503 = vst [vmem:[#allocation2 + $0x78] sm:$0xf] %v439
    %504 = vst [vmem:[#allocation2 + $0x7c] sm:$0xf] %v440
    %v505 = vpack.c.bf16 %v193, %v189
    %v506 = vpack.c.bf16 %v203, %v199
    %v507 = vpack.c.bf16 %v213, %v209
    %v508 = vpack.c.bf16 %v223, %v219
    %v509 = vpack.c.bf16 %v233, %v229
    %v510 = vpack.c.bf16 %v243, %v239
    %v511 = vpack.c.bf16 %v253, %v249
    %v512 = vpack.c.bf16 %v263, %v259
    %v513 = vpack.c.bf16 %v273, %v269
    %v514 = vpack.c.bf16 %v283, %v279
    %v515 = vpack.c.bf16 %v293, %v289
    %v516 = vpack.c.bf16 %v303, %v299
    %v517 = vpack.c.bf16 %v313, %v309
    %v518 = vpack.c.bf16 %v323, %v319
    %v519 = vpack.c.bf16 %v333, %v329
    %v520 = vpack.c.bf16 %v343, %v339
    %v537 = vunpack.c.l.b16 %v505
    %v538 = vunpack.c.h.b16 %v505
    %v539 = vunpack.c.l.b16 %v506
    %v540 = vunpack.c.h.b16 %v506
    %v541 = vunpack.c.l.b16 %v507
    %v542 = vunpack.c.h.b16 %v507
    %v543 = vunpack.c.l.b16 %v508
    %v544 = vunpack.c.h.b16 %v508
    %v545 = vunpack.c.l.b16 %v509
    %v546 = vunpack.c.h.b16 %v509
    %v547 = vunpack.c.l.b16 %v510
    %v548 = vunpack.c.h.b16 %v510
    %v549 = vunpack.c.l.b16 %v511
    %v550 = vunpack.c.h.b16 %v511
    %v551 = vunpack.c.l.b16 %v512
    %v552 = vunpack.c.h.b16 %v512
    %v553 = vunpack.c.l.b16 %v513
    %v554 = vunpack.c.h.b16 %v513
    %v555 = vunpack.c.l.b16 %v514
    %v556 = vunpack.c.h.b16 %v514
    %v557 = vunpack.c.l.b16 %v515
    %v558 = vunpack.c.h.b16 %v515
    %v559 = vunpack.c.l.b16 %v516
    %v560 = vunpack.c.h.b16 %v516
    %v561 = vunpack.c.l.b16 %v517
    %v562 = vunpack.c.h.b16 %v517
    %v563 = vunpack.c.l.b16 %v518
    %v564 = vunpack.c.h.b16 %v518
    %v565 = vunpack.c.l.b16 %v519
    %v566 = vunpack.c.h.b16 %v519
    %v567 = vunpack.c.l.b16 %v520
    %v568 = vunpack.c.h.b16 %v520
    %v569 = vpack.c.b16 %v537, %v537
    %v570 = vpack.c.b16 %v538, %v538
    %v571 = vpack.c.b16 %v539, %v539
    %v572 = vpack.c.b16 %v540, %v540
    %v573 = vpack.c.b16 %v541, %v541
    %v574 = vpack.c.b16 %v542, %v542
    %v575 = vpack.c.b16 %v543, %v543
    %v576 = vpack.c.b16 %v544, %v544
    %v577 = vpack.c.b16 %v545, %v545
    %v578 = vpack.c.b16 %v546, %v546
    %v579 = vpack.c.b16 %v547, %v547
    %v580 = vpack.c.b16 %v548, %v548
    %v581 = vpack.c.b16 %v549, %v549
    %v582 = vpack.c.b16 %v550, %v550
    %v583 = vpack.c.b16 %v551, %v551
    %v584 = vpack.c.b16 %v552, %v552
    %v585 = vpack.c.b16 %v553, %v553
    %v586 = vpack.c.b16 %v554, %v554
    %v587 = vpack.c.b16 %v555, %v555
    %v588 = vpack.c.b16 %v556, %v556
    %v589 = vpack.c.b16 %v557, %v557
    %v590 = vpack.c.b16 %v558, %v558
    %v591 = vpack.c.b16 %v559, %v559
    %v592 = vpack.c.b16 %v560, %v560
    %v593 = vpack.c.b16 %v561, %v561
    %v594 = vpack.c.b16 %v562, %v562
    %v595 = vpack.c.b16 %v563, %v563
    %v596 = vpack.c.b16 %v564, %v564
    %v597 = vpack.c.b16 %v565, %v565
    %v598 = vpack.c.b16 %v566, %v566
    %v599 = vpack.c.b16 %v567, %v567
    %v600 = vpack.c.b16 %v568, %v568
    %633 = vst [vmem:[#allocation4] sm:$0xf] %v569
    %634 = vst [vmem:[#allocation4 + $0x4] sm:$0xf] %v570
    %635 = vst [vmem:[#allocation4 + $0x8] sm:$0xf] %v571
    %636 = vst [vmem:[#allocation4 + $0xc] sm:$0xf] %v572
    %637 = vst [vmem:[#allocation4 + $0x10] sm:$0xf] %v573
    %638 = vst [vmem:[#allocation4 + $0x14] sm:$0xf] %v574
    %639 = vst [vmem:[#allocation4 + $0x18] sm:$0xf] %v575
    %640 = vst [vmem:[#allocation4 + $0x1c] sm:$0xf] %v576
    %641 = vst [vmem:[#allocation4 + $0x20] sm:$0xf] %v577
    %642 = vst [vmem:[#allocation4 + $0x24] sm:$0xf] %v578
    %643 = vst [vmem:[#allocation4 + $0x28] sm:$0xf] %v579
    %644 = vst [vmem:[#allocation4 + $0x2c] sm:$0xf] %v580
    %645 = vst [vmem:[#allocation4 + $0x30] sm:$0xf] %v581
    %646 = vst [vmem:[#allocation4 + $0x34] sm:$0xf] %v582
    %647 = vst [vmem:[#allocation4 + $0x38] sm:$0xf] %v583
    %648 = vst [vmem:[#allocation4 + $0x3c] sm:$0xf] %v584
    %649 = vst [vmem:[#allocation4 + $0x40] sm:$0xf] %v585
    %650 = vst [vmem:[#allocation4 + $0x44] sm:$0xf] %v586
    %651 = vst [vmem:[#allocation4 + $0x48] sm:$0xf] %v587
    %652 = vst [vmem:[#allocation4 + $0x4c] sm:$0xf] %v588
    %653 = vst [vmem:[#allocation4 + $0x50] sm:$0xf] %v589
    %654 = vst [vmem:[#allocation4 + $0x54] sm:$0xf] %v590
    %655 = vst [vmem:[#allocation4 + $0x58] sm:$0xf] %v591
    %656 = vst [vmem:[#allocation4 + $0x5c] sm:$0xf] %v592
    %657 = vst [vmem:[#allocation4 + $0x60] sm:$0xf] %v593
    %658 = vst [vmem:[#allocation4 + $0x64] sm:$0xf] %v594
    %659 = vst [vmem:[#allocation4 + $0x68] sm:$0xf] %v595
    %660 = vst [vmem:[#allocation4 + $0x6c] sm:$0xf] %v596
    %661 = vst [vmem:[#allocation4 + $0x70] sm:$0xf] %v597
    %662 = vst [vmem:[#allocation4 + $0x74] sm:$0xf] %v598
    %663 = vst [vmem:[#allocation4 + $0x78] sm:$0xf] %v599
    %664 = vst [vmem:[#allocation4 + $0x7c] sm:$0xf] %v600
    // Predicated region
    $region14: #{tpu_custom_call.1} parent=1 // pred_check
      _
    $region15: #{tpu_custom_call.1} parent=1 // pred_check_branch
      %666 = sbr.rel (0) target = $region17
    $region16: #{tpu_custom_call.1} parent=1 // pred_region
      %s668 = ssub.s32 2048, 2048
      %669 = vsyncadd [#allocation3], %s668
      %s670 = sshll.u32 [#allocation2], 4
      %s671 = int_to_ptr.vmem [resolvable:$true] %s670
      %676 = dma.vmem_to_hbm [thread:$0]  %s671, 2048, %s3, [#allocation3], 64, 64, 4
    $region17: #{tpu_custom_call.1} parent=1 // pred_fallthru
      _
    // Predicated region
    $region18: #{tpu_custom_call.1} parent=1 // pred_check
      _
    $region19: #{tpu_custom_call.1} parent=1 // pred_check_branch
      %678 = sbr.rel (0) target = $region21
    $region20: #{tpu_custom_call.1} parent=1 // pred_region
      %s680 = ssub.s32 2048, 2048
      %681 = vsyncadd [#allocation5], %s680
      %s682 = sshll.u32 [#allocation4], 4
      %s683 = int_to_ptr.vmem [resolvable:$true] %s682
      %688 = dma.vmem_to_hbm [thread:$0]  %s683, 2048, %s4, [#allocation5], 64, 64, 4
    $region21: #{tpu_custom_call.1} parent=1 // pred_fallthru
      _
    // Predicated region
    $region22: #{tpu_custom_call.1} parent=1 // pred_check
      _
    $region23: #{tpu_custom_call.1} parent=1 // pred_check_branch
      %690 = sbr.rel (0) target = $region25
    $region24: #{tpu_custom_call.1} parent=1 // pred_region
      %691 = dma.done [#allocation3], 2048
    $region25: #{tpu_custom_call.1} parent=1 // pred_fallthru
      _
    // Predicated region
    $region26: #{tpu_custom_call.1} parent=1 // pred_check
      _
    $region27: #{tpu_custom_call.1} parent=1 // pred_check_branch
      %693 = sbr.rel (0) target = $region29
    $region28: #{tpu_custom_call.1} parent=1 // pred_region
      %694 = dma.done [#allocation5], 2048
    $region29: #{tpu_custom_call.1} parent=1 // pred_fallthru
      _
    %695 = vsyncpa [#allocation3], 1
    %696 = vsyncpa [#allocation5], 1

</llo_original>
